<compile_context>
chip_gen: v7x
topology: tpu7x:2x2x1
jax: 0.10.0
libtpu: 0.0.40
codegen_flags: <defaults>
</compile_context>

<pallas_src>
import functools

import jax
import jax.numpy as jnp
from jax.experimental import pallas as pl
from jax.experimental.pallas import tpu as pltpu

EPS = 1e-5
NEG_SLOPE = 0.2


def _round_up(x, m):
    return (x + m - 1) // m * m


def _probe_vmem_bytes():
    # Trace-time hardware query; fall back to the smallest (v7x) budget if unavailable.
    try:
        return int(pltpu.get_tpu_info().vmem_capacity_bytes)
    except Exception:
        return 64 * 1024 * 1024


_VMEM_PHYS = _probe_vmem_bytes()
if _VMEM_PHYS >= (100 << 20):          # v5e / v6e: 128 MiB VMEM
    _TP_CAP = 4096
    _VMEM_LIMIT = 96 * 1024 * 1024
else:                                  # v7x: 64 MiB VMEM
    _TP_CAP = 2048
    _VMEM_LIMIT = 48 * 1024 * 1024
_TP2_CAP = 2 * _TP_CAP                 # pass 2 has no K axis / accumulator


# ---------------- Pass 1: tiled matmul + per-tile BN partial statistics ----------------
def conv_stats_kernel(patch_ref, w_ref, y_ref, stats_ref, acc_ref):
    # patch_ref: (TP, TK) bf16 tile of the im2col slab
    # w_ref:     (Kp, Cp) bf16 -- full weight, VMEM-resident (constant index_map)
    # y_ref:     (TP, Cp) bf16 output tile (written once, at the last K step)
    # stats_ref: (8, Cp)  f32  -- row 0 = sum(y), row 1 = sum(y*y), rest zero
    # acc_ref:   (TP, Cp) f32  VMEM scratch accumulator, resident across the K axis
    k = pl.program_id(1)
    tk = patch_ref.shape[1]

    @pl.when(k == 0)
    def _init():
        acc_ref[...] = jnp.zeros_like(acc_ref)
        stats_ref[...] = jnp.zeros_like(stats_ref)

    start = pl.multiple_of(k * tk, tk)
    acc_ref[...] += jnp.dot(patch_ref[...], w_ref[pl.ds(start, tk), :],
                            preferred_element_type=jnp.float32)

    @pl.when(k == pl.num_programs(1) - 1)
    def _finish():
        acc = acc_ref[...]
        y_ref[...] = acc.astype(y_ref.dtype)
        stats_ref[0:1, :] = jnp.sum(acc, axis=0, keepdims=True)
        stats_ref[1:2, :] = jnp.sum(acc * acc, axis=0, keepdims=True)


# ---------------- Pass 2: normalize (precomputed scale/shift) + LeakyReLU ----------------
def bn_lrelu_kernel(y_ref, scale_ref, shift_ref, out_ref):
    z = y_ref[...].astype(jnp.float32) * scale_ref[...] + shift_ref[...]
    out_ref[...] = jnp.where(z > 0, z, NEG_SLOPE * z).astype(out_ref.dtype)


@functools.partial(jax.jit, static_argnames=("stride",))
def cnn_block(x_nchw, weight, gamma, beta, stride):
    """x_nchw: (N, Cin, H, W); weight: (Cout, Cin, 4, 4); gamma/beta: (Cout,)."""
    N, Cin, H, W = x_nchw.shape
    Cout = weight.shape[0]
    KH = KW = 4

    # ---- glue: layout + reflect pad + im2col, in bf16 from the start ----
    x = jnp.transpose(x_nchw, (0, 2, 3, 1)).astype(jnp.bfloat16)            # NHWC
    x_pad = jnp.pad(x, ((0, 0), (1, 1), (1, 1), (0, 0)), mode="reflect")    # padding=1, reflect

    Hout = (H + 2 - KH) // stride + 1
    Wout = (W + 2 - KW) // stride + 1

    cols = []
    for kh in range(KH):
        for kw in range(KW):
            cols.append(
                x_pad[:, kh:kh + stride * Hout:stride, kw:kw + stride * Wout:stride, :]
            )  # (N, Hout, Wout, Cin)
    # column order ((kh*KW + kw)*Cin + cin) must match the weight matrix below.
    patches = jnp.concatenate(cols, axis=-1).reshape(N * Hout * Wout, KH * KW * Cin)
    P, K = patches.shape

    # ---- tile/pad sizing (lane-dense: K, Cout -> multiples of 128) ----
    Cp = _round_up(Cout, 128)
    # nP >= 2 whenever possible (both v7x TensorCores busy); multiples of 16 keep the
    # bf16 blocks sublane-aligned.
    TP = min(_TP_CAP, _round_up((P + 1) // 2, 16))
    Pp = _round_up(P, TP)
    nP = Pp // TP
    Kp = _round_up(K, 128)
    TK = min(512, Kp)
    Kp = _round_up(Kp, TK)
    nK = Kp // TK

    # Pad straight into the tiled bf16 layout (zero rows/cols contribute nothing
    # to the matmul or the BN sums).
    patches_p = jnp.pad(patches, ((0, Pp - P), (0, Kp - K)))
    w_mat = jnp.transpose(weight, (2, 3, 1, 0)).reshape(K, Cout).astype(jnp.bfloat16)
    w_p = jnp.pad(w_mat, ((0, Kp - K), (0, Cp - Cout)))

    # ---- pass 1: conv-as-matmul + per-P-tile partial statistics ----
    y, part_stats = pl.pallas_call(
        conv_stats_kernel,
        out_shape=(
            jax.ShapeDtypeStruct((Pp, Cp), jnp.bfloat16),
            jax.ShapeDtypeStruct((8 * nP, Cp), jnp.float32),
        ),
        grid_spec=pltpu.PrefetchScalarGridSpec(
            num_scalar_prefetch=0,
            grid=(nP, nK),
            in_specs=[
                pl.BlockSpec((TP, TK), lambda i, k: (i, k)),
                # Full weight with constant index_map -> DMA'd from HBM exactly once
                # instead of once per P-tile.  (Kept on default buffering; the VMEM
                # budget below fits comfortably even at Cin=Cout=512.)
                pl.BlockSpec((Kp, Cp), lambda i, k: (0, 0)),
            ],
            out_specs=(
                pl.BlockSpec((TP, Cp), lambda i, k: (i, 0)),
                pl.BlockSpec((8, Cp), lambda i, k: (i, 0)),
            ),
            scratch_shapes=[pltpu.VMEM((TP, Cp), jnp.float32)],
        ),
        compiler_params=pltpu.CompilerParams(
            dimension_semantics=("parallel", "arbitrary"),
            vmem_limit_bytes=_VMEM_LIMIT,
        ),
    )(patches_p, w_p)

    # ---- glue: cross-tile reduction of the tiny partial stats, fold BN affine ----
    stats = part_stats.reshape(nP, 8, Cp).sum(axis=0)         # (8, Cp)
    mean = stats[0] / P
    var = jnp.maximum(stats[1] / P - mean * mean, 0.0)        # biased (train-mode BN)
    gamma_p = jnp.pad(gamma.astype(jnp.float32), (0, Cp - Cout))
    beta_p = jnp.pad(beta.astype(jnp.float32), (0, Cp - Cout))
    scale = gamma_p * jax.lax.rsqrt(var + EPS)
    shift = beta_p - mean * scale

    # ---- pass 2: y*scale + shift, LeakyReLU(0.2), written in place over y ----
    # Larger row tile than pass 1 (no accumulator / K axis; only VMEM limits it),
    # chosen as a multiple of TP that divides Pp exactly.
    TP2 = TP
    for c in range(nP, 0, -1):
        if nP % c == 0 and c * TP <= _TP2_CAP:
            TP2 = c * TP
            break
    nP2 = Pp // TP2

    out_flat = pl.pallas_call(
        bn_lrelu_kernel,
        out_shape=jax.ShapeDtypeStruct((Pp, Cp), jnp.bfloat16),
        grid_spec=pltpu.PrefetchScalarGridSpec(
            num_scalar_prefetch=0,
            grid=(nP2,),
            in_specs=[
                pl.BlockSpec((TP2, Cp), lambda i: (i, 0)),
                pl.BlockSpec((1, Cp), lambda i: (0, 0)),
                pl.BlockSpec((1, Cp), lambda i: (0, 0)),
            ],
            out_specs=pl.BlockSpec((TP2, Cp), lambda i: (i, 0)),
        ),
        input_output_aliases={0: 0},     # overwrite y in place, no second HBM slab
        compiler_params=pltpu.CompilerParams(
            dimension_semantics=("parallel",),
            vmem_limit_bytes=_VMEM_LIMIT,
        ),
    )(y, scale.reshape(1, Cp), shift.reshape(1, Cp))

    # slice off padding, back to NCHW, f32 (matches the PyTorch module's dtype)
    out = out_flat[:P, :Cout].astype(jnp.float32).reshape(N, Hout, Wout, Cout)
    return jnp.transpose(out, (0, 3, 1, 2))


def cnn_block_reference(x_nchw, weight, gamma, beta, stride):
    """Pure-JAX f32 reference of the PyTorch CNNBlock forward."""
    x = x_nchw.astype(jnp.float32)
    x_pad = jnp.pad(x, ((0, 0), (0, 0), (1, 1), (1, 1)), mode="reflect")
    y = jax.lax.conv_general_dilated(
        x_pad, weight.astype(jnp.float32),
        window_strides=(stride, stride), padding="VALID",
        dimension_numbers=("NCHW", "OIHW", "NCHW"))
    mean = y.mean(axis=(0, 2, 3), keepdims=True)
    var = y.var(axis=(0, 2, 3), keepdims=True)  # biased
    yh = (y - mean) * jax.lax.rsqrt(var + EPS)
    z = yh * gamma.reshape(1, -1, 1, 1) + beta.reshape(1, -1, 1, 1)
    return jnp.where(z > 0, z, NEG_SLOPE * z)


if __name__ == "__main__":
    # Small deterministic example consistent with CNNBlock(in_channels=4, out_channels=8, stride=2)
    key = jax.random.PRNGKey(0)
    k_x, k_w = jax.random.split(key)

    N, Cin, H, W = 2, 4, 16, 16
    Cout, stride = 8, 2

    x = jax.random.normal(k_x, (N, Cin, H, W), dtype=jnp.float32)
    weight = jax.random.normal(k_w, (Cout, Cin, 4, 4), dtype=jnp.float32) * 0.1
    gamma = jnp.ones((Cout,), dtype=jnp.float32)   # BatchNorm2d default affine init
    beta = jnp.zeros((Cout,), dtype=jnp.float32)

    out = cnn_block(x, weight, gamma, beta, stride=stride)
    jax.block_until_ready(out)
    assert out.shape == (N, Cout, H // stride, W // stride), out.shape

    ref = cnn_block_reference(x, weight, gamma, beta, stride)
    max_err = float(jnp.max(jnp.abs(out - ref)))
    # bf16 MXU inputs and bf16 activations vs f32 reference => loose tolerance
    assert max_err < 0.15, f"max abs error {max_err}"

    print("KERNEL_OK")
</pallas_src>

<mosaic_0001>
module attributes {stable_mosaic.version = 11 : i64} {
  func.func @conv_stats_kernel(%arg0: i32, %arg1: i32, %arg2: memref<64x128xbf16, #tpu.memory_space<vmem>>, %arg3: memref<128x128xbf16, #tpu.memory_space<vmem>>, %arg4: memref<64x128xbf16, #tpu.memory_space<vmem>>, %arg5: memref<8x128xf32, #tpu.memory_space<vmem>>, %arg6: memref<64x128xf32, #tpu.memory_space<vmem>>) attributes {dimension_semantics = [#tpu.dimension_semantics<parallel>, #tpu.dimension_semantics<arbitrary>], iteration_bounds = array<i64: 2, 1>, scalar_prefetch = 0 : i64, scratch_operands = 1 : i64, tpu.core_type = #tpu.core_type<tc>, window_params = [{transform_indices = @transform_0, window_bounds = array<i64: 64, 128>}, {pipeline_mode = #tpu.pipeline_mode<synchronous>, transform_indices = @transform_1, window_bounds = array<i64: 128, 128>}, {transform_indices = @transform_2, window_bounds = array<i64: 64, 128>}, {transform_indices = @transform_3, window_bounds = array<i64: 8, 128>}]} {
    %c0_i32 = arith.constant 0 : i32
    %0 = arith.cmpi eq, %arg1, %c0_i32 : i32
    %1 = arith.extui %0 : i1 to i32
    %c0_i32_0 = arith.constant 0 : i32
    %2 = arith.cmpi ne, %1, %c0_i32_0 : i32
    scf.if %2 {
      %cst_9 = arith.constant 0.000000e+00 : f32
      %15 = vector.broadcast %cst_9 : f32 to vector<64x128xf32>
      %c0_10 = arith.constant 0 : index
      %c0_11 = arith.constant 0 : index
      %16 = vector.load %arg6[%c0_10, %c0_11] : memref<64x128xf32, #tpu.memory_space<vmem>>, vector<64x128xf32>
      tpu.vector_store %arg6[%c0_10, %c0_11], %15 {strides = array<i32>} : memref<64x128xf32, #tpu.memory_space<vmem>>, vector<64x128xf32>,
      %cst_12 = arith.constant 0.000000e+00 : f32
      %17 = vector.broadcast %cst_12 : f32 to vector<8x128xf32>
      %c0_13 = arith.constant 0 : index
      %c0_14 = arith.constant 0 : index
      %18 = vector.load %arg5[%c0_13, %c0_14] : memref<8x128xf32, #tpu.memory_space<vmem>>, vector<8x128xf32>
      tpu.vector_store %arg5[%c0_13, %c0_14], %17 {strides = array<i32>} : memref<8x128xf32, #tpu.memory_space<vmem>>, vector<8x128xf32>,
    } else {
    }
    %c128_i32 = arith.constant 128 : i32
    %3 = arith.muli %arg1, %c128_i32 : i32
    %4 = tpu.assume_multiple %3, 128 : i32
    %c0 = arith.constant 0 : index
    %c0_1 = arith.constant 0 : index
    %5 = vector.load %arg6[%c0, %c0_1] : memref<64x128xf32, #tpu.memory_space<vmem>>, vector<64x128xf32>
    %c0_2 = arith.constant 0 : index
    %c0_3 = arith.constant 0 : index
    %6 = vector.load %arg2[%c0_2, %c0_3] : memref<64x128xbf16, #tpu.memory_space<vmem>>, vector<64x128xbf16>
    %7 = arith.index_cast %4 : i32 to index
    %c0_4 = arith.constant 0 : index
    %8 = vector.load %arg3[%7, %c0_4] : memref<128x128xbf16, #tpu.memory_space<vmem>>, vector<128x128xbf16>
    %cst = arith.constant dense<0.000000e+00> : vector<64x128xf32>
    %9 = tpu.matmul %6, %8, %cst {dimension_numbers = #tpu.dot_dimension_numbers<[1], [0], [0], [1], [0, 0, 1, 1], [], []>} : vector<64x128xbf16>, vector<128x128xbf16>, vector<64x128xf32> -> vector<64x128xf32>
    %10 = arith.addf %5, %9 : vector<64x128xf32>
    %c0_5 = arith.constant 0 : index
    %c0_6 = arith.constant 0 : index
    %11 = vector.load %arg6[%c0_5, %c0_6] : memref<64x128xf32, #tpu.memory_space<vmem>>, vector<64x128xf32>
    tpu.vector_store %arg6[%c0_5, %c0_6], %10 {strides = array<i32>} : memref<64x128xf32, #tpu.memory_space<vmem>>, vector<64x128xf32>,
    %c0_i32_7 = arith.constant 0 : i32
    %12 = arith.cmpi eq, %arg1, %c0_i32_7 : i32
    %13 = arith.extui %12 : i1 to i32
    %c0_i32_8 = arith.constant 0 : i32
    %14 = arith.cmpi ne, %13, %c0_i32_8 : i32
    scf.if %14 {
      %c0_9 = arith.constant 0 : index
      %c0_10 = arith.constant 0 : index
      %15 = vector.load %arg6[%c0_9, %c0_10] : memref<64x128xf32, #tpu.memory_space<vmem>>, vector<64x128xf32>
      %16 = arith.truncf %15 : vector<64x128xf32> to vector<64x128xbf16>
      %c0_11 = arith.constant 0 : index
      %c0_12 = arith.constant 0 : index
      %17 = vector.load %arg4[%c0_11, %c0_12] : memref<64x128xbf16, #tpu.memory_space<vmem>>, vector<64x128xbf16>
      tpu.vector_store %arg4[%c0_11, %c0_12], %16 {strides = array<i32>} : memref<64x128xbf16, #tpu.memory_space<vmem>>, vector<64x128xbf16>,
      %cst_13 = arith.constant dense<0.000000e+00> : vector<128xf32>
      %18 = vector.multi_reduction <add>, %15, %cst_13 [0] : vector<64x128xf32> to vector<128xf32>
      %19 = vector.shape_cast %18 : vector<128xf32> to vector<1x128xf32>
      %c0_14 = arith.constant 0 : index
      %c0_15 = arith.constant 0 : index
      %20 = vector.load %arg5[%c0_14, %c0_15] : memref<8x128xf32, #tpu.memory_space<vmem>>, vector<1x128xf32>
      tpu.vector_store %arg5[%c0_14, %c0_15], %19 {strides = array<i32>} : memref<8x128xf32, #tpu.memory_space<vmem>>, vector<1x128xf32>,
      %21 = arith.mulf %15, %15 : vector<64x128xf32>
      %cst_16 = arith.constant dense<0.000000e+00> : vector<128xf32>
      %22 = vector.multi_reduction <add>, %21, %cst_16 [0] : vector<64x128xf32> to vector<128xf32>
      %23 = vector.shape_cast %22 : vector<128xf32> to vector<1x128xf32>
      %c1 = arith.constant 1 : index
      %c0_17 = arith.constant 0 : index
      %24 = vector.load %arg5[%c1, %c0_17] : memref<8x128xf32, #tpu.memory_space<vmem>>, vector<1x128xf32>
      tpu.vector_store %arg5[%c1, %c0_17], %23 {strides = array<i32>} : memref<8x128xf32, #tpu.memory_space<vmem>>, vector<1x128xf32>,
    } else {
    }
    return
  }
  func.func @transform_0(%arg0: i32, %arg1: i32) -> (i32, i32) {
    %c0_i32 = arith.constant 0 : i32
    return %arg0, %arg1 : i32, i32
  }
  func.func @transform_1(%arg0: i32, %arg1: i32) -> (i32, i32) {
    %c0_i32 = arith.constant 0 : i32
    %c0_i32_0 = arith.constant 0 : i32
    %c0_i32_1 = arith.constant 0 : i32
    return %c0_i32, %c0_i32_0 : i32, i32
  }
  func.func @transform_2(%arg0: i32, %arg1: i32) -> (i32, i32) {
    %c0_i32 = arith.constant 0 : i32
    %c0_i32_0 = arith.constant 0 : i32
    return %arg0, %c0_i32 : i32, i32
  }
  func.func @transform_3(%arg0: i32, %arg1: i32) -> (i32, i32) {
    %c0_i32 = arith.constant 0 : i32
    %c0_i32_0 = arith.constant 0 : i32
    return %arg0, %c0_i32 : i32, i32
  }
}

module attributes {stable_mosaic.version = 11 : i64} {
  func.func @bn_lrelu_kernel(%arg0: i32, %arg1: memref<128x128xbf16, #tpu.memory_space<vmem>>, %arg2: memref<1x128xf32, #tpu.memory_space<vmem>>, %arg3: memref<1x128xf32, #tpu.memory_space<vmem>>, %arg4: memref<128x128xbf16, #tpu.memory_space<vmem>>) attributes {dimension_semantics = [#tpu.dimension_semantics<parallel>], iteration_bounds = array<i64: 1>, scalar_prefetch = 0 : i64, scratch_operands = 0 : i64, tpu.core_type = #tpu.core_type<tc>, window_params = [{transform_indices = @transform_0, window_bounds = array<i64: 128, 128>}, {pipeline_mode = #tpu.pipeline_mode<synchronous>, transform_indices = @transform_1, window_bounds = array<i64: 1, 128>}, {pipeline_mode = #tpu.pipeline_mode<synchronous>, transform_indices = @transform_2, window_bounds = array<i64: 1, 128>}, {transform_indices = @transform_3, window_bounds = array<i64: 128, 128>}]} {
    %c0 = arith.constant 0 : index
    %c0_0 = arith.constant 0 : index
    %0 = vector.load %arg1[%c0, %c0_0] : memref<128x128xbf16, #tpu.memory_space<vmem>>, vector<128x128xbf16>
    %1 = arith.extf %0 : vector<128x128xbf16> to vector<128x128xf32>
    %c0_1 = arith.constant 0 : index
    %c0_2 = arith.constant 0 : index
    %2 = vector.load %arg2[%c0_1, %c0_2] : memref<1x128xf32, #tpu.memory_space<vmem>>, vector<1x128xf32>
    %3 = vector.broadcast %2 : vector<1x128xf32> to vector<128x128xf32>
    %4 = arith.mulf %1, %3 : vector<128x128xf32>
    %c0_3 = arith.constant 0 : index
    %c0_4 = arith.constant 0 : index
    %5 = vector.load %arg3[%c0_3, %c0_4] : memref<1x128xf32, #tpu.memory_space<vmem>>, vector<1x128xf32>
    %6 = vector.broadcast %5 : vector<1x128xf32> to vector<128x128xf32>
    %7 = arith.addf %4, %6 : vector<128x128xf32>
    %cst = arith.constant 0.000000e+00 : f32
    %8 = vector.broadcast %cst : f32 to vector<128x128xf32>
    %9 = arith.cmpf ogt, %7, %8 : vector<128x128xf32>
    %cst_5 = arith.constant 2.000000e-01 : f32
    %10 = vector.broadcast %cst_5 : f32 to vector<128x128xf32>
    %11 = arith.mulf %10, %7 : vector<128x128xf32>
    %12 = arith.select %9, %7, %11 : vector<128x128xi1>, vector<128x128xf32>
    %13 = arith.truncf %12 : vector<128x128xf32> to vector<128x128xbf16>
    %c0_6 = arith.constant 0 : index
    %c0_7 = arith.constant 0 : index
    %14 = vector.load %arg4[%c0_6, %c0_7] : memref<128x128xbf16, #tpu.memory_space<vmem>>, vector<128x128xbf16>
    tpu.vector_store %arg4[%c0_6, %c0_7], %13 {strides = array<i32>} : memref<128x128xbf16, #tpu.memory_space<vmem>>, vector<128x128xbf16>,
    return
  }
  func.func @transform_0(%arg0: i32) -> (i32, i32) {
    %c0_i32 = arith.constant 0 : i32
    %c0_i32_0 = arith.constant 0 : i32
    return %arg0, %c0_i32 : i32, i32
  }
  func.func @transform_1(%arg0: i32) -> (i32, i32) {
    %c0_i32 = arith.constant 0 : i32
    %c0_i32_0 = arith.constant 0 : i32
    %c0_i32_1 = arith.constant 0 : i32
    return %c0_i32, %c0_i32_0 : i32, i32
  }
  func.func @transform_2(%arg0: i32) -> (i32, i32) {
    %c0_i32 = arith.constant 0 : i32
    %c0_i32_0 = arith.constant 0 : i32
    %c0_i32_1 = arith.constant 0 : i32
    return %c0_i32, %c0_i32_0 : i32, i32
  }
  func.func @transform_3(%arg0: i32) -> (i32, i32) {
    %c0_i32 = arith.constant 0 : i32
    %c0_i32_0 = arith.constant 0 : i32
    return %arg0, %c0_i32 : i32, i32
  }
}

</mosaic_0001>

<llo_original>
// kernel: cnn_block.2
$region0: #{cnn_block.2}
  #allocation0 [shape = 'u32[]', space=smem, size = 0x4, offset = 0x4, fixed_abs, tag = 'smem constant byte address 0x4 - core index']
  #allocation1 [shape = 'u32[144,128]{1,0:T(1,128)}', space=vmem, size = 0x12000, scoped, tag = 'internal scratch']
  #allocation2 [shape = 'f32[64,128]{1,0:T(8,128)}', space=vmem, size = 0x8000, scoped, tag = 'scratch operand']
  %s0 = inlined_call_operand.vmem [shape: bf16[128,128], index: 0, kind: input, shape index: {}]
  %s1 = inlined_call_operand.vmem [shape: bf16[128,128], index: 1, kind: input, shape index: {}]
  %s2 = inlined_call_operand.vmem [shape: bf16[128,128], index: 2, kind: output, shape index: {0}]
  %s3 = inlined_call_operand.vmem [shape: f32[16,128], index: 3, kind: output, shape index: {1}]
  %4 = xla_tuple %s2, %s3
  %s5 = sld [smem:[#allocation0]]
  $region57: #{cnn_block.2} parent=0
    _
  %s7 = ssub.s32 1, %s5
  %s8 = scalar_select 0, %s7, %s5
  loop: start=0, step=1, limit=4
  $region2: #{cnn_block.2} parent=0 // loop_pre_header
    _
  $region3: #{cnn_block.2} parent=0 // loop_header
    %s10 = sphi 0, %s14
    %p11 = scmp.ge.s32.totalorder %s10, 4
    %s17 = sphi 0, %s29
    %s18 = sphi 0, %s25
    %s19 = sphi 0, %s17
    %s20 = sphi 0, %s18
    %s21 = sphi 0, %s19
    %s22 = sphi 0, %s20
    %s34 = sphi 0, %s36
    %s37 = sphi 0, %s34
    %s38 = sphi 0, %s37
    %s54 = sphi 0, %s38
    %s58 = sphi 0, %s58
    %s60 = sphi 0, %s58
    %s61 = sphi 0, %s60
    %s75 = sphi 0, %s61
    %s81 = sphi 0, %s83
    %s84 = sphi 0, %s81
    %s85 = sphi 0, %s84
    %s101 = sphi 0, %s85
    %s107 = sphi 0, %s109
    %s110 = sphi 0, %s107
    %s111 = sphi 0, %s110
    %s127 = sphi 0, %s111
  $region4: #{cnn_block.2} parent=0 // loop_header_branch
    %13 = sbr.rel (%p11) target = $region8
  $region5: #{cnn_block.2} parent=0 // loop_body
    %s15 = ssub.s32 %s10, 1
    %s16 = ssub.s32 %s10, 2
    %s23 = sadd.s32 1, %s18
    %p24 = scmp.ge.s32.totalorder %s23, 1
    %s25 = scalar_select %p24, 0, %s23
    %s26 = sadd.s32 1, %s17
    %s27 = scalar_select %p24, %s26, %s17
    %p28 = scmp.ge.s32.totalorder %s27, 2
    %s29 = scalar_select %p28, 0, %s27
    %s30 = ssub.s32 %s17, %s29
    %s31 = ssub.s32 %s18, %s25
    %s32 = sor.u32 %s30, %s31
    %p33 = scmp.eq.s32.totalorder %s32, 0
    %s35 = sadd.s32 %s34, 1
    %s36 = scalar_select %p33, %s34, %s35
    %p39 = pneg %p33
    %p40 = scmp.eq.s32.totalorder %s10, 1
    %p41 = por %p39, %p40
    %p42 = scmp.ne.s32.totalorder %s34, %s37
    %p43 = scmp.eq.s32.totalorder %s10, 0
    %p44 = por %p42, %p43
    %p45 = scmp.ne.s32.totalorder %s34, %s37
    %p46 = scmp.eq.s32.totalorder %s15, 1
    %p47 = por %p45, %p46
    %p48 = scmp.ne.s32.totalorder %s37, %s38
    %p49 = scmp.eq.s32.totalorder %s15, 0
    %p50 = por %p48, %p49
    %p51 = scmp.ne.s32.totalorder %s37, %s38
    %p52 = scmp.eq.s32.totalorder %s16, 1
    %p53 = por %p51, %p52
    %p55 = scmp.ne.s32.totalorder %s38, %s54
    %p56 = scmp.eq.s32.totalorder %s16, 0
    %p57 = por %p55, %p56
    %s59 = sadd.s32 %s58, 1
    %p62 = scmp.eq.s32.totalorder %s10, 1
    %p63 = scmp.ne.s32.totalorder %s58, %s60
    %p64 = scmp.eq.s32.totalorder %s10, 0
    %p65 = por %p63, %p64
    %p66 = scmp.ne.s32.totalorder %s58, %s60
    %p67 = scmp.eq.s32.totalorder %s15, 1
    %p68 = por %p66, %p67
    %p69 = scmp.ne.s32.totalorder %s60, %s61
    %p70 = scmp.eq.s32.totalorder %s15, 0
    %p71 = por %p69, %p70
    %p72 = scmp.ne.s32.totalorder %s60, %s61
    %p73 = scmp.eq.s32.totalorder %s16, 1
    %p74 = por %p72, %p73
    %p76 = scmp.ne.s32.totalorder %s61, %s75
    %p77 = scmp.eq.s32.totalorder %s16, 0
    %p78 = por %p76, %p77
    %s79 = ssub.s32 %s17, %s29
    %p80 = scmp.eq.s32.totalorder %s79, 0
    %s82 = sadd.s32 %s81, 1
    %s83 = scalar_select %p80, %s81, %s82
    %p86 = pneg %p80
    %p87 = scmp.eq.s32.totalorder %s10, 1
    %p88 = por %p86, %p87
    %p89 = scmp.ne.s32.totalorder %s81, %s84
    %p90 = scmp.eq.s32.totalorder %s10, 0
    %p91 = por %p89, %p90
    %p92 = scmp.ne.s32.totalorder %s81, %s84
    %p93 = scmp.eq.s32.totalorder %s15, 1
    %p94 = por %p92, %p93
    %p95 = scmp.ne.s32.totalorder %s84, %s85
    %p96 = scmp.eq.s32.totalorder %s15, 0
    %p97 = por %p95, %p96
    %p98 = scmp.ne.s32.totalorder %s84, %s85
    %p99 = scmp.eq.s32.totalorder %s16, 1
    %p100 = por %p98, %p99
    %p102 = scmp.ne.s32.totalorder %s85, %s101
    %p103 = scmp.eq.s32.totalorder %s16, 0
    %p104 = por %p102, %p103
    %s105 = ssub.s32 %s17, %s29
    %p106 = scmp.eq.s32.totalorder %s105, 0
    %s108 = sadd.s32 %s107, 1
    %s109 = scalar_select %p106, %s107, %s108
    %p112 = pneg %p106
    %p113 = scmp.eq.s32.totalorder %s10, 1
    %p114 = por %p112, %p113
    %p115 = scmp.ne.s32.totalorder %s107, %s110
    %p116 = scmp.eq.s32.totalorder %s10, 0
    %p117 = por %p115, %p116
    %p118 = scmp.ne.s32.totalorder %s107, %s110
    %p119 = scmp.eq.s32.totalorder %s15, 1
    %p120 = por %p118, %p119
    %p121 = scmp.ne.s32.totalorder %s110, %s111
    %p122 = scmp.eq.s32.totalorder %s15, 0
    %p123 = por %p121, %p122
    %p124 = scmp.ne.s32.totalorder %s110, %s111
    %p125 = scmp.eq.s32.totalorder %s16, 1
    %p126 = por %p124, %p125
    %p128 = scmp.ne.s32.totalorder %s111, %s127
    %p129 = scmp.eq.s32.totalorder %s16, 0
    %p130 = por %p128, %p129
    %p131 = scmp.le.s32.totalorder 1, %s10
    %p132 = scmp.lt.s32.totalorder %s10, 3
    %p133 = pnand %p131, %p132
    %p134 = pneg %p133
    // Predicated region
    $region9: #{cnn_block.2} parent=5 // pred_check
      _
    $region10: #{cnn_block.2} parent=5 // pred_check_branch
      %136 = sbr.rel (%p133) target = $region12
    $region11: #{cnn_block.2} parent=5 // pred_region
      %s137 = ssub.s32 %s10, 1
      // Predicated region
      $region13: #{cnn_block.2} parent=11 // pred_check
        %p138 = pneg %p71
      $region14: #{cnn_block.2} parent=11 // pred_check_branch
        %140 = sbr.rel (%p138) target = $region16
      $region15: #{cnn_block.2} parent=11 // pred_region
        _
      $region16: #{cnn_block.2} parent=11 // pred_fallthru
        _
    $region12: #{cnn_block.2} parent=5 // pred_fallthru
      _
    %p141 = scmp.lt.s32.totalorder %s10, 2
    // Predicated region
    $region17: #{cnn_block.2} parent=5 // pred_check
      %p142 = pneg %p141
    $region18: #{cnn_block.2} parent=5 // pred_check_branch
      %144 = sbr.rel (%p142) target = $region20
    $region19: #{cnn_block.2} parent=5 // pred_region
      // Predicated region
      $region21: #{cnn_block.2} parent=19 // pred_check
        %p145 = pneg %p44
      $region22: #{cnn_block.2} parent=19 // pred_check_branch
        %147 = sbr.rel (%p145) target = $region24
      $region23: #{cnn_block.2} parent=19 // pred_region
        %s148 = smul.u32 8, %s17
        %p149 = scmp.lt.s32.totalorder %s148, 15
        %s150 = scalar_select %p149, %s148, 15
        %p151 = scmp.lt.s32.totalorder %s18, 0
        %s152 = scalar_select %p151, %s18, 0
        %s153 = sadd.s32 %s152, %s150
        %s154 = smul.addr %s153, 4
        %s155 = scalar_lea.vmem %s0, %s154
        %s156 = smul.u32 8, %s17
      $region24: #{cnn_block.2} parent=19 // pred_fallthru
        _
    $region20: #{cnn_block.2} parent=5 // pred_fallthru
      _
    %p157 = scmp.le.s32.totalorder 1, %s10
    %p158 = scmp.lt.s32.totalorder %s10, 3
    %p159 = pnand %p157, %p158
    %p160 = pneg %p159
    // Predicated region
    $region25: #{cnn_block.2} parent=5 // pred_check
      _
    $region26: #{cnn_block.2} parent=5 // pred_check_branch
      %162 = sbr.rel (%p159) target = $region28
    $region27: #{cnn_block.2} parent=5 // pred_region
      %s163 = ssub.s32 %s10, 1
      %s164 = smul.u32 8, %s19
      %p165 = scmp.lt.s32.totalorder %s164, 15
      %s166 = scalar_select %p165, %s164, 15
      %p167 = scmp.lt.s32.totalorder %s20, 0
      %s168 = scalar_select %p167, %s20, 0
      %s169 = sadd.s32 %s168, %s166
      %s170 = smul.addr %s169, 4
      %s171 = scalar_lea.vmem %s0, %s170
      %p172 = pneg %p50
      %p173 = pneg %p47
      %p174 = pneg %p71
      %p175 = pneg %p68
      %p176 = pneg %p97
      %p177 = pneg %p94
      %s178 = smul.u32 8, %s19
      %p179 = scmp.lt.s32.totalorder %s178, 15
      %s180 = scalar_select %p179, %s178, 15
      %s181 = smul.addr %s180, 4
      %s182 = scalar_lea.vmem %s2, %s181
      %p183 = pneg %p123
      %p184 = pneg %p120
      %p185 = scmp.lt.s32.totalorder %s19, 1
      %s186 = scalar_select %p185, %s19, 1
      %s187 = smul.addr %s186, 8
      %s188 = scalar_lea.vmem %s3, %s187
      %s189 = smul.u32 8, %s19
      %p190 = scmp.lt.s32.totalorder %s189, 15
      %s191 = scalar_select %p190, %s189, 15
      %p192 = scmp.lt.s32.totalorder %s20, 0
      %s193 = scalar_select %p192, %s20, 0
      %s194 = sadd.s32 %s193, %s191
      %s195 = smul.addr %s194, 4
      %s196 = scalar_lea.vmem %s0, %s195
      %s197 = smul.u32 8, %s19
      %s198 = smul.u32 8, %s19
      %p199 = scmp.lt.s32.totalorder %s198, 15
      %s200 = scalar_select %p199, %s198, 15
      %s201 = smul.addr %s200, 4
      %s202 = scalar_lea.vmem %s2, %s201
      %s203 = smul.u32 8, %s19
      %p204 = scmp.lt.s32.totalorder %s19, 1
      %s205 = scalar_select %p204, %s19, 1
      %s206 = smul.addr %s205, 8
      %s207 = scalar_lea.vmem %s3, %s206
      %p209 = scmp.eq.s32.totalorder %s20, 0
      // Predicated region
      $region29: #{cnn_block.2} parent=27 // pred_check
        %p210 = pneg %p209
      $region30: #{cnn_block.2} parent=27 // pred_check_branch
        %212 = sbr.rel (%p210) target = $region32
      $region31: #{cnn_block.2} parent=27 // pred_region
        %213 = vst [vmem:[#allocation2] sm:$0xff] 0.0
        %214 = vst [vmem:[#allocation2 + $0x8] sm:$0xff] 0.0
        %215 = vst [vmem:[#allocation2 + $0x10] sm:$0xff] 0.0
        %216 = vst [vmem:[#allocation2 + $0x18] sm:$0xff] 0.0
        %217 = vst [vmem:[#allocation2 + $0x20] sm:$0xff] 0.0
        %218 = vst [vmem:[#allocation2 + $0x28] sm:$0xff] 0.0
        %219 = vst [vmem:[#allocation2 + $0x30] sm:$0xff] 0.0
        %220 = vst [vmem:[#allocation2 + $0x38] sm:$0xff] 0.0
        %221 = vst [vmem:[%s207] sm:$0xff] 0.0
      $region32: #{cnn_block.2} parent=27 // pred_fallthru
        _
      %s222 = smul.u32 %s20, 128
      %v223 = vld [vmem:[#allocation2] sm:$0xff]
      %v224 = vld [vmem:[#allocation2 + $0x8] sm:$0xff]
      %v225 = vld [vmem:[#allocation2 + $0x10] sm:$0xff]
      %v226 = vld [vmem:[#allocation2 + $0x18] sm:$0xff]
      %v227 = vld [vmem:[#allocation2 + $0x20] sm:$0xff]
      %v228 = vld [vmem:[#allocation2 + $0x28] sm:$0xff]
      %v229 = vld [vmem:[#allocation2 + $0x30] sm:$0xff]
      %v230 = vld [vmem:[#allocation2 + $0x38] sm:$0xff]
      %v231 = vld [vmem:[%s196] sm:$0xf]
      %v232 = vld [vmem:[%s196 + $0x4] sm:$0xf]
      %v233 = vld [vmem:[%s196 + $0x8] sm:$0xf]
      %v234 = vld [vmem:[%s196 + $0xc] sm:$0xf]
      %v235 = vld [vmem:[%s196 + $0x10] sm:$0xf]
      %v236 = vld [vmem:[%s196 + $0x14] sm:$0xf]
      %v237 = vld [vmem:[%s196 + $0x18] sm:$0xf]
      %v238 = vld [vmem:[%s196 + $0x1c] sm:$0xf]
      %s239 = sshra.s32 %s222, 3
      %s240 = sand.u32 %s222, 7
      %s241 = smul.addr %s239, 4
      %s242 = scalar_lea.vmem %s1, %s241
      %v243 = vld [vmem:[%s242] sm:$0xf]
      %v244 = vld [vmem:[%s242 + $0x4] sm:$0xf]
      %v245 = vld [vmem:[%s242 + $0x8] sm:$0xf]
      %v246 = vld [vmem:[%s242 + $0xc] sm:$0xf]
      %v247 = vld [vmem:[%s242 + $0x10] sm:$0xf]
      %v248 = vld [vmem:[%s242 + $0x14] sm:$0xf]
      %v249 = vld [vmem:[%s242 + $0x18] sm:$0xf]
      %v250 = vld [vmem:[%s242 + $0x1c] sm:$0xf]
      %v251 = vld [vmem:[%s242 + $0x20] sm:$0xf]
      %v252 = vld [vmem:[%s242 + $0x24] sm:$0xf]
      %v253 = vld [vmem:[%s242 + $0x28] sm:$0xf]
      %v254 = vld [vmem:[%s242 + $0x2c] sm:$0xf]
      %v255 = vld [vmem:[%s242 + $0x30] sm:$0xf]
      %v256 = vld [vmem:[%s242 + $0x34] sm:$0xf]
      %v257 = vld [vmem:[%s242 + $0x38] sm:$0xf]
      %v258 = vld [vmem:[%s242 + $0x3c] sm:$0xf]
      %v267 = vunpack.c.l.b16 %v231
      %v268 = vunpack.c.l.b16 %v232
      %v269 = vunpack.c.l.b16 %v233
      %v270 = vunpack.c.l.b16 %v234
      %v271 = vunpack.c.l.b16 %v235
      %v272 = vunpack.c.l.b16 %v236
      %v273 = vunpack.c.l.b16 %v237
      %v274 = vunpack.c.l.b16 %v238
      %v275 = vpack.c.b16 %v268, %v267
      %v276 = vpack.c.b16 %v270, %v269
      %v277 = vpack.c.b16 %v272, %v271
      %v278 = vpack.c.b16 %v274, %v273
      %v299 = vunpack.c.l.b16 %v243
      %v300 = vunpack.c.l.b16 %v244
      %v301 = vunpack.c.l.b16 %v245
      %v302 = vunpack.c.l.b16 %v246
      %v303 = vunpack.c.l.b16 %v247
      %v304 = vunpack.c.l.b16 %v248
      %v305 = vunpack.c.l.b16 %v249
      %v306 = vunpack.c.l.b16 %v250
      %v307 = vunpack.c.l.b16 %v251
      %v308 = vunpack.c.l.b16 %v252
      %v309 = vunpack.c.l.b16 %v253
      %v310 = vunpack.c.l.b16 %v254
      %v311 = vunpack.c.l.b16 %v255
      %v312 = vunpack.c.l.b16 %v256
      %v313 = vunpack.c.l.b16 %v257
      %v314 = vunpack.c.l.b16 %v258
      %v315 = vpack.c.b16 %v300, %v299
      %v316 = vpack.c.b16 %v302, %v301
      %v317 = vpack.c.b16 %v304, %v303
      %v318 = vpack.c.b16 %v306, %v305
      %v319 = vpack.c.b16 %v308, %v307
      %v320 = vpack.c.b16 %v310, %v309
      %v321 = vpack.c.b16 %v312, %v311
      %v322 = vpack.c.b16 %v314, %v313
      %331 = vmatprep.subr.bf16.mxu0 0
      %332 = vmatpush1.bf16.msra.mxu0 %v315
      %333 = vmatprep.subr.bf16.mxu0 0
      %334 = vmatpush1.bf16.msra.mxu0 %v316
      %335 = vmatprep.subr.bf16.mxu0 0
      %336 = vmatpush1.bf16.msra.mxu0 %v317
      %337 = vmatprep.subr.bf16.mxu0 0
      %338 = vmatpush1.bf16.msra.mxu0 %v318
      %339 = vmatprep.subr.bf16.mxu0 0
      %340 = vmatpush1.bf16.msra.mxu0 %v319
      %341 = vmatprep.subr.bf16.mxu0 0
      %342 = vmatpush1.bf16.msra.mxu0 %v320
      %343 = vmatprep.subr.bf16.mxu0 0
      %344 = vmatpush1.bf16.msra.mxu0 %v321
      %345 = vmatprep.subr.bf16.mxu0 0
      %346 = vmatpush1.bf16.msra.mxu0 %v322
      %347 = vmatprep.subr.bf16.mxu0 0
      %348 = vmatpush1.bf16.msra.mxu0 0
      %349 = vmatprep.subr.bf16.mxu0 0
      %350 = vmatpush1.bf16.msra.mxu0 0
      %351 = vmatprep.subr.bf16.mxu0 0
      %352 = vmatpush1.bf16.msra.mxu0 0
      %353 = vmatprep.subr.bf16.mxu0 0
      %354 = vmatpush1.bf16.msra.mxu0 0
      %355 = vmatprep.subr.bf16.mxu0 0
      %356 = vmatpush1.bf16.msra.mxu0 0
      %357 = vmatprep.subr.bf16.mxu0 0
      %358 = vmatpush1.bf16.msra.mxu0 0
      %359 = vmatprep.subr.bf16.mxu0 0
      %360 = vmatpush1.bf16.msra.mxu0 0
      %361 = vmatprep.subr.bf16.mxu0 0
      %362 = vmatpush1.bf16.msra.mxu0 0
      %363 = vmatprep.mubr.bf16.mxu0 0
      %364 = vmatmul.mubr.bf16.gmra.mrb[0].mxu0 %v275
      %v365 = vpop.f32.mrb[0].mxu0
      %v366 = vadd.f32 0.0, %v365
      %v367 = vpop.f32.mrb[0].mxu0
      %v368 = vpop.f32.mrb[0].mxu0
      %v369 = vadd.f32 0.0, %v368
      %v370 = vpop.f32.mrb[0].mxu0
      %371 = vmatprep.mubr.bf16.mxu0 0
      %372 = vmatmul.mubr.bf16.gmra.mrb[0].mxu0 %v276
      %v373 = vpop.f32.mrb[0].mxu0
      %v374 = vadd.f32 0.0, %v373
      %v375 = vpop.f32.mrb[0].mxu0
      %v376 = vpop.f32.mrb[0].mxu0
      %v377 = vadd.f32 0.0, %v376
      %v378 = vpop.f32.mrb[0].mxu0
      %379 = vmatprep.mubr.bf16.mxu0 0
      %380 = vmatmul.mubr.bf16.gmra.mrb[0].mxu0 %v277
      %v381 = vpop.f32.mrb[0].mxu0
      %v382 = vadd.f32 0.0, %v381
      %v383 = vpop.f32.mrb[0].mxu0
      %v384 = vpop.f32.mrb[0].mxu0
      %v385 = vadd.f32 0.0, %v384
      %v386 = vpop.f32.mrb[0].mxu0
      %387 = vmatprep.mubr.bf16.mxu0 0
      %388 = vmatmul.mubr.bf16.gmra.mrb[0].mxu0 %v278
      %v389 = vpop.f32.mrb[0].mxu0
      %v390 = vadd.f32 0.0, %v389
      %v391 = vpop.f32.mrb[0].mxu0
      %v392 = vpop.f32.mrb[0].mxu0
      %v393 = vadd.f32 0.0, %v392
      %v394 = vpop.f32.mrb[0].mxu0
      %395 = vdwg.mxu0
      %v396 = vadd.f32 %v223, %v366
      %v397 = vadd.f32 %v224, %v369
      %v398 = vadd.f32 %v225, %v374
      %v399 = vadd.f32 %v226, %v377
      %v400 = vadd.f32 %v227, %v382
      %v401 = vadd.f32 %v228, %v385
      %v402 = vadd.f32 %v229, %v390
      %v403 = vadd.f32 %v230, %v393
      %404 = vst [vmem:[#allocation2] sm:$0xff] %v396
      %405 = vst [vmem:[#allocation2 + $0x8] sm:$0xff] %v397
      %406 = vst [vmem:[#allocation2 + $0x10] sm:$0xff] %v398
      %407 = vst [vmem:[#allocation2 + $0x18] sm:$0xff] %v399
      %408 = vst [vmem:[#allocation2 + $0x20] sm:$0xff] %v400
      %409 = vst [vmem:[#allocation2 + $0x28] sm:$0xff] %v401
      %410 = vst [vmem:[#allocation2 + $0x30] sm:$0xff] %v402
      %411 = vst [vmem:[#allocation2 + $0x38] sm:$0xff] %v403
      // Predicated region
      $region33: #{cnn_block.2} parent=27 // pred_check
        %p412 = pneg %p209
      $region34: #{cnn_block.2} parent=27 // pred_check_branch
        %414 = sbr.rel (%p412) target = $region36
      $region35: #{cnn_block.2} parent=27 // pred_region
        %v415 = vld [vmem:[#allocation2] sm:$0xff]
        %v416 = vld [vmem:[#allocation2 + $0x8] sm:$0xff]
        %v417 = vld [vmem:[#allocation2 + $0x10] sm:$0xff]
        %v418 = vld [vmem:[#allocation2 + $0x18] sm:$0xff]
        %v419 = vld [vmem:[#allocation2 + $0x20] sm:$0xff]
        %v420 = vld [vmem:[#allocation2 + $0x28] sm:$0xff]
        %v421 = vld [vmem:[#allocation2 + $0x30] sm:$0xff]
        %v422 = vld [vmem:[#allocation2 + $0x38] sm:$0xff]
        %v423 = vpack.c.bf16 %v416, %v415
        %v424 = vpack.c.bf16 %v418, %v417
        %v425 = vpack.c.bf16 %v420, %v419
        %v426 = vpack.c.bf16 %v422, %v421
        %v431 = vunpack.c.l.b16 %v423
        %v432 = vunpack.c.h.b16 %v423
        %v433 = vunpack.c.l.b16 %v424
        %v434 = vunpack.c.h.b16 %v424
        %v435 = vunpack.c.l.b16 %v425
        %v436 = vunpack.c.h.b16 %v425
        %v437 = vunpack.c.l.b16 %v426
        %v438 = vunpack.c.h.b16 %v426
        %v439 = vpack.c.b16 %v431, %v431
        %v440 = vpack.c.b16 %v432, %v432
        %v441 = vpack.c.b16 %v433, %v433
        %v442 = vpack.c.b16 %v434, %v434
        %v443 = vpack.c.b16 %v435, %v435
        %v444 = vpack.c.b16 %v436, %v436
        %v445 = vpack.c.b16 %v437, %v437
        %v446 = vpack.c.b16 %v438, %v438
        %455 = vst [vmem:[%s202] sm:$0xf] %v439
        %456 = vst [vmem:[%s202 + $0x4] sm:$0xf] %v440
        %457 = vst [vmem:[%s202 + $0x8] sm:$0xf] %v441
        %458 = vst [vmem:[%s202 + $0xc] sm:$0xf] %v442
        %459 = vst [vmem:[%s202 + $0x10] sm:$0xf] %v443
        %460 = vst [vmem:[%s202 + $0x14] sm:$0xf] %v444
        %461 = vst [vmem:[%s202 + $0x18] sm:$0xf] %v445
        %462 = vst [vmem:[%s202 + $0x1c] sm:$0xf] %v446
        %v463 = vadd.f32 %v415, %v416
        %v464 = vadd.f32 %v463, %v417
        %v465 = vadd.f32 %v464, %v418
        %v466 = vadd.f32 %v465, %v419
        %v467 = vadd.f32 %v466, %v420
        %v468 = vadd.f32 %v467, %v421
        %v469 = vadd.f32 %v468, %v422
        %v470 = vrot.slane %v469, 4
        %v471 = vadd.f32 %v469, %v470
        %v472 = vrot.slane %v471, 2
        %v473 = vadd.f32 %v471, %v472
        %v474 = vrot.slane %v473, 1
        %v475 = vadd.f32 %v473, %v474
        %476 = vst [vmem:[%s207] sm:$0x1] %v475
        %v477 = vmul.f32 %v415, %v415
        %v478 = vmul.f32 %v416, %v416
        %v479 = vmul.f32 %v417, %v417
        %v480 = vmul.f32 %v418, %v418
        %v481 = vmul.f32 %v419, %v419
        %v482 = vmul.f32 %v420, %v420
        %v483 = vmul.f32 %v421, %v421
        %v484 = vmul.f32 %v422, %v422
        %v485 = vadd.f32 %v477, %v478
        %v486 = vadd.f32 %v485, %v479
        %v487 = vadd.f32 %v486, %v480
        %v488 = vadd.f32 %v487, %v481
        %v489 = vadd.f32 %v488, %v482
        %v490 = vadd.f32 %v489, %v483
        %v491 = vadd.f32 %v490, %v484
        %v492 = vrot.slane %v491, 4
        %v493 = vadd.f32 %v491, %v492
        %v494 = vrot.slane %v493, 2
        %v495 = vadd.f32 %v493, %v494
        %v496 = vrot.slane %v495, 1
        %v497 = vadd.f32 %v495, %v496
        %498 = vst [vmem:[%s207 + $0x1] sm:$0x1] %v497
      $region36: #{cnn_block.2} parent=27 // pred_fallthru
        _
      %s499 = smul.u32 8, %s19
      %p500 = scmp.lt.s32.totalorder %s499, 15
      %s501 = scalar_select %p500, %s499, 15
      %s502 = smul.addr %s501, 4
      %s503 = scalar_lea.vmem %s2, %s502
      %p504 = scmp.lt.s32.totalorder %s19, 1
      %s505 = scalar_select %p504, %s19, 1
      %s506 = smul.addr %s505, 8
      %s507 = scalar_lea.vmem %s3, %s506
      // Predicated region
      $region37: #{cnn_block.2} parent=27 // pred_check
        %p508 = pneg %p94
      $region38: #{cnn_block.2} parent=27 // pred_check_branch
        %510 = sbr.rel (%p508) target = $region40
      $region39: #{cnn_block.2} parent=27 // pred_region
        %s511 = smul.u32 8, %s19
      $region40: #{cnn_block.2} parent=27 // pred_fallthru
        _
      // Predicated region
      $region41: #{cnn_block.2} parent=27 // pred_check
        %p512 = pneg %p120
      $region42: #{cnn_block.2} parent=27 // pred_check_branch
        %514 = sbr.rel (%p512) target = $region44
      $region43: #{cnn_block.2} parent=27 // pred_region
        _
      $region44: #{cnn_block.2} parent=27 // pred_fallthru
        _
    $region28: #{cnn_block.2} parent=5 // pred_fallthru
      _
    %p515 = scmp.le.s32.totalorder 2, %s10
    // Predicated region
    $region45: #{cnn_block.2} parent=5 // pred_check
      %p516 = pneg %p515
    $region46: #{cnn_block.2} parent=5 // pred_check_branch
      %518 = sbr.rel (%p516) target = $region48
    $region47: #{cnn_block.2} parent=5 // pred_region
      %s519 = ssub.s32 %s10, 2
      // Predicated region
      $region49: #{cnn_block.2} parent=47 // pred_check
        %p520 = pneg %p100
      $region50: #{cnn_block.2} parent=47 // pred_check_branch
        %522 = sbr.rel (%p520) target = $region52
      $region51: #{cnn_block.2} parent=47 // pred_region
        %s523 = smul.u32 8, %s21
        %p524 = scmp.lt.s32.totalorder %s523, 15
        %s525 = scalar_select %p524, %s523, 15
        %s526 = smul.addr %s525, 4
        %s527 = scalar_lea.vmem %s2, %s526
      $region52: #{cnn_block.2} parent=47 // pred_fallthru
        _
      // Predicated region
      $region53: #{cnn_block.2} parent=47 // pred_check
        %p528 = pneg %p126
      $region54: #{cnn_block.2} parent=47 // pred_check_branch
        %530 = sbr.rel (%p528) target = $region56
      $region55: #{cnn_block.2} parent=47 // pred_region
        %p531 = scmp.lt.s32.totalorder %s21, 1
        %s532 = scalar_select %p531, %s21, 1
        %s533 = smul.addr %s532, 8
        %s534 = scalar_lea.vmem %s3, %s533
      $region56: #{cnn_block.2} parent=47 // pred_fallthru
        _
    $region48: #{cnn_block.2} parent=5 // pred_fallthru
      _
  $region6: #{cnn_block.2} parent=0 // loop_footer
    %s14 = sadd.s32 1, %s10
  $region7: #{cnn_block.2} parent=0 // loop_footer_branch
    %9 = sbr.rel target = $region3
  $region8: #{cnn_block.2} parent=0 // loop_exit
    _

// kernel: cnn_block.3
$region0: #{cnn_block.3}
  #allocation0 [shape = 'u32[]', space=smem, size = 0x4, offset = 0x4, fixed_abs, tag = 'smem constant byte address 0x4 - core index']
  #allocation1 [shape = 'u32[144,128]{1,0:T(1,128)}', space=vmem, size = 0x12000, scoped, tag = 'internal scratch']
  %s0 = inlined_call_operand.vmem [shape: bf16[128,128], index: 0, kind: input, shape index: {}, may-alias: {0,3}]
  %s1 = inlined_call_operand.vmem [shape: f32[1,128], index: 1, kind: input, shape index: {}]
  %s2 = inlined_call_operand.vmem [shape: f32[1,128], index: 2, kind: input, shape index: {}]
  %s3 = inlined_call_operand.vmem [shape: bf16[128,128], index: 3, kind: output, shape index: {}, may-alias: {0,3}]
  %s4 = sld [smem:[#allocation0]]
  $region22: #{cnn_block.3} parent=0
    _
  %s6 = ssub.s32 1, %s4
  %s7 = scalar_select 0, %s6, %s4
  // Predicated region
  $region2: #{cnn_block.3} parent=0 // pred_check
    _
  $region3: #{cnn_block.3} parent=0 // pred_check_branch
    %9 = sbr.rel (0) target = $region5
  $region4: #{cnn_block.3} parent=0 // pred_region
    _
  $region5: #{cnn_block.3} parent=0 // pred_fallthru
    _
  // Predicated region
  $region6: #{cnn_block.3} parent=0 // pred_check
    _
  $region7: #{cnn_block.3} parent=0 // pred_check_branch
    %11 = sbr.rel (0) target = $region9
  $region8: #{cnn_block.3} parent=0 // pred_region
    _
  $region9: #{cnn_block.3} parent=0 // pred_fallthru
    _
  // Predicated region
  $region10: #{cnn_block.3} parent=0 // pred_check
    _
  $region11: #{cnn_block.3} parent=0 // pred_check_branch
    %13 = sbr.rel (0) target = $region13
  $region12: #{cnn_block.3} parent=0 // pred_region
    _
  $region13: #{cnn_block.3} parent=0 // pred_fallthru
    _
  %v14 = vld [vmem:[%s0] sm:$0xf]
  %v15 = vld [vmem:[%s0 + $0x4] sm:$0xf]
  %v16 = vld [vmem:[%s0 + $0x8] sm:$0xf]
  %v17 = vld [vmem:[%s0 + $0xc] sm:$0xf]
  %v18 = vld [vmem:[%s0 + $0x10] sm:$0xf]
  %v19 = vld [vmem:[%s0 + $0x14] sm:$0xf]
  %v20 = vld [vmem:[%s0 + $0x18] sm:$0xf]
  %v21 = vld [vmem:[%s0 + $0x1c] sm:$0xf]
  %v22 = vld [vmem:[%s0 + $0x20] sm:$0xf]
  %v23 = vld [vmem:[%s0 + $0x24] sm:$0xf]
  %v24 = vld [vmem:[%s0 + $0x28] sm:$0xf]
  %v25 = vld [vmem:[%s0 + $0x2c] sm:$0xf]
  %v26 = vld [vmem:[%s0 + $0x30] sm:$0xf]
  %v27 = vld [vmem:[%s0 + $0x34] sm:$0xf]
  %v28 = vld [vmem:[%s0 + $0x38] sm:$0xf]
  %v29 = vld [vmem:[%s0 + $0x3c] sm:$0xf]
  %v30 = vunpack.c.l.bf16 %v14
  %v31 = vunpack.c.l.bf16 %v15
  %v32 = vunpack.c.l.bf16 %v16
  %v33 = vunpack.c.l.bf16 %v17
  %v34 = vunpack.c.l.bf16 %v18
  %v35 = vunpack.c.l.bf16 %v19
  %v36 = vunpack.c.l.bf16 %v20
  %v37 = vunpack.c.l.bf16 %v21
  %v38 = vunpack.c.l.bf16 %v22
  %v39 = vunpack.c.l.bf16 %v23
  %v40 = vunpack.c.l.bf16 %v24
  %v41 = vunpack.c.l.bf16 %v25
  %v42 = vunpack.c.l.bf16 %v26
  %v43 = vunpack.c.l.bf16 %v27
  %v44 = vunpack.c.l.bf16 %v28
  %v45 = vunpack.c.l.bf16 %v29
  %v46 = vld [vmem:[%s1] sm:$0x1]
  %v48 = vlaneseq
  %v49 = vshrl.u32 %v48, 7
  %v50 = vsub.s32 0, %v49
  %v51 = vrot.slane %v46, %v50
  %v53 = vmul.f32 %v30, %v51
  %v54 = vmul.f32 %v31, %v51
  %v55 = vmul.f32 %v32, %v51
  %v56 = vmul.f32 %v33, %v51
  %v57 = vmul.f32 %v34, %v51
  %v58 = vmul.f32 %v35, %v51
  %v59 = vmul.f32 %v36, %v51
  %v60 = vmul.f32 %v37, %v51
  %v61 = vmul.f32 %v38, %v51
  %v62 = vmul.f32 %v39, %v51
  %v63 = vmul.f32 %v40, %v51
  %v64 = vmul.f32 %v41, %v51
  %v65 = vmul.f32 %v42, %v51
  %v66 = vmul.f32 %v43, %v51
  %v67 = vmul.f32 %v44, %v51
  %v68 = vmul.f32 %v45, %v51
  %v69 = vld [vmem:[%s2] sm:$0x1]
  %v71 = vlaneseq
  %v72 = vshrl.u32 %v71, 7
  %v73 = vsub.s32 0, %v72
  %v74 = vrot.slane %v69, %v73
  %v76 = vadd.f32 %v53, %v74
  %v77 = vadd.f32 %v54, %v74
  %v78 = vadd.f32 %v55, %v74
  %v79 = vadd.f32 %v56, %v74
  %v80 = vadd.f32 %v57, %v74
  %v81 = vadd.f32 %v58, %v74
  %v82 = vadd.f32 %v59, %v74
  %v83 = vadd.f32 %v60, %v74
  %v84 = vadd.f32 %v61, %v74
  %v85 = vadd.f32 %v62, %v74
  %v86 = vadd.f32 %v63, %v74
  %v87 = vadd.f32 %v64, %v74
  %v88 = vadd.f32 %v65, %v74
  %v89 = vadd.f32 %v66, %v74
  %v90 = vadd.f32 %v67, %v74
  %v91 = vadd.f32 %v68, %v74
  %vm92 = vcmp.gt.f32.partialorder %v76, 0.0
  %vm93 = vcmp.gt.f32.partialorder %v77, 0.0
  %vm94 = vcmp.gt.f32.partialorder %v78, 0.0
  %vm95 = vcmp.gt.f32.partialorder %v79, 0.0
  %vm96 = vcmp.gt.f32.partialorder %v80, 0.0
  %vm97 = vcmp.gt.f32.partialorder %v81, 0.0
  %vm98 = vcmp.gt.f32.partialorder %v82, 0.0
  %vm99 = vcmp.gt.f32.partialorder %v83, 0.0
  %vm100 = vcmp.gt.f32.partialorder %v84, 0.0
  %vm101 = vcmp.gt.f32.partialorder %v85, 0.0
  %vm102 = vcmp.gt.f32.partialorder %v86, 0.0
  %vm103 = vcmp.gt.f32.partialorder %v87, 0.0
  %vm104 = vcmp.gt.f32.partialorder %v88, 0.0
  %vm105 = vcmp.gt.f32.partialorder %v89, 0.0
  %vm106 = vcmp.gt.f32.partialorder %v90, 0.0
  %vm107 = vcmp.gt.f32.partialorder %v91, 0.0
  %v108 = vmul.f32 %v76, 0.2
  %v109 = vmul.f32 %v77, 0.2
  %v110 = vmul.f32 %v78, 0.2
  %v111 = vmul.f32 %v79, 0.2
  %v112 = vmul.f32 %v80, 0.2
  %v113 = vmul.f32 %v81, 0.2
  %v114 = vmul.f32 %v82, 0.2
  %v115 = vmul.f32 %v83, 0.2
  %v116 = vmul.f32 %v84, 0.2
  %v117 = vmul.f32 %v85, 0.2
  %v118 = vmul.f32 %v86, 0.2
  %v119 = vmul.f32 %v87, 0.2
  %v120 = vmul.f32 %v88, 0.2
  %v121 = vmul.f32 %v89, 0.2
  %v122 = vmul.f32 %v90, 0.2
  %v123 = vmul.f32 %v91, 0.2
  %v124 = vsel %vm92, %v76, %v108
  %v125 = vsel %vm93, %v77, %v109
  %v126 = vsel %vm94, %v78, %v110
  %v127 = vsel %vm95, %v79, %v111
  %v128 = vsel %vm96, %v80, %v112
  %v129 = vsel %vm97, %v81, %v113
  %v130 = vsel %vm98, %v82, %v114
  %v131 = vsel %vm99, %v83, %v115
  %v132 = vsel %vm100, %v84, %v116
  %v133 = vsel %vm101, %v85, %v117
  %v134 = vsel %vm102, %v86, %v118
  %v135 = vsel %vm103, %v87, %v119
  %v136 = vsel %vm104, %v88, %v120
  %v137 = vsel %vm105, %v89, %v121
  %v138 = vsel %vm106, %v90, %v122
  %v139 = vsel %vm107, %v91, %v123
  %v140 = vpack.c.bf16 %v125, %v124
  %v141 = vpack.c.bf16 %v127, %v126
  %v142 = vpack.c.bf16 %v129, %v128
  %v143 = vpack.c.bf16 %v131, %v130
  %v144 = vpack.c.bf16 %v133, %v132
  %v145 = vpack.c.bf16 %v135, %v134
  %v146 = vpack.c.bf16 %v137, %v136
  %v147 = vpack.c.bf16 %v139, %v138
  %v156 = vunpack.c.l.b16 %v140
  %v157 = vunpack.c.h.b16 %v140
  %v158 = vunpack.c.l.b16 %v141
  %v159 = vunpack.c.h.b16 %v141
  %v160 = vunpack.c.l.b16 %v142
  %v161 = vunpack.c.h.b16 %v142
  %v162 = vunpack.c.l.b16 %v143
  %v163 = vunpack.c.h.b16 %v143
  %v164 = vunpack.c.l.b16 %v144
  %v165 = vunpack.c.h.b16 %v144
  %v166 = vunpack.c.l.b16 %v145
  %v167 = vunpack.c.h.b16 %v145
  %v168 = vunpack.c.l.b16 %v146
  %v169 = vunpack.c.h.b16 %v146
  %v170 = vunpack.c.l.b16 %v147
  %v171 = vunpack.c.h.b16 %v147
  %v172 = vpack.c.b16 %v156, %v156
  %v173 = vpack.c.b16 %v157, %v157
  %v174 = vpack.c.b16 %v158, %v158
  %v175 = vpack.c.b16 %v159, %v159
  %v176 = vpack.c.b16 %v160, %v160
  %v177 = vpack.c.b16 %v161, %v161
  %v178 = vpack.c.b16 %v162, %v162
  %v179 = vpack.c.b16 %v163, %v163
  %v180 = vpack.c.b16 %v164, %v164
  %v181 = vpack.c.b16 %v165, %v165
  %v182 = vpack.c.b16 %v166, %v166
  %v183 = vpack.c.b16 %v167, %v167
  %v184 = vpack.c.b16 %v168, %v168
  %v185 = vpack.c.b16 %v169, %v169
  %v186 = vpack.c.b16 %v170, %v170
  %v187 = vpack.c.b16 %v171, %v171
  %204 = vst [vmem:[%s3] sm:$0xf] %v172
  %205 = vst [vmem:[%s3 + $0x4] sm:$0xf] %v173
  %206 = vst [vmem:[%s3 + $0x8] sm:$0xf] %v174
  %207 = vst [vmem:[%s3 + $0xc] sm:$0xf] %v175
  %208 = vst [vmem:[%s3 + $0x10] sm:$0xf] %v176
  %209 = vst [vmem:[%s3 + $0x14] sm:$0xf] %v177
  %210 = vst [vmem:[%s3 + $0x18] sm:$0xf] %v178
  %211 = vst [vmem:[%s3 + $0x1c] sm:$0xf] %v179
  %212 = vst [vmem:[%s3 + $0x20] sm:$0xf] %v180
  %213 = vst [vmem:[%s3 + $0x24] sm:$0xf] %v181
  %214 = vst [vmem:[%s3 + $0x28] sm:$0xf] %v182
  %215 = vst [vmem:[%s3 + $0x2c] sm:$0xf] %v183
  %216 = vst [vmem:[%s3 + $0x30] sm:$0xf] %v184
  %217 = vst [vmem:[%s3 + $0x34] sm:$0xf] %v185
  %218 = vst [vmem:[%s3 + $0x38] sm:$0xf] %v186
  %219 = vst [vmem:[%s3 + $0x3c] sm:$0xf] %v187
  // Predicated region
  $region14: #{cnn_block.3} parent=0 // pred_check
    _
  $region15: #{cnn_block.3} parent=0 // pred_check_branch
    %221 = sbr.rel (0) target = $region17
  $region16: #{cnn_block.3} parent=0 // pred_region
    _
  $region17: #{cnn_block.3} parent=0 // pred_fallthru
    _
  // Predicated region
  $region18: #{cnn_block.3} parent=0 // pred_check
    _
  $region19: #{cnn_block.3} parent=0 // pred_check_branch
    %223 = sbr.rel (0) target = $region21
  $region20: #{cnn_block.3} parent=0 // pred_region
    _
  $region21: #{cnn_block.3} parent=0 // pred_fallthru
    _

</llo_original>
